<compile_context>
chip_gen: v7x
topology: tpu7x:2x2x1
jax: 0.10.0
libtpu: 0.0.40
codegen_flags: <defaults>
</compile_context>

<pallas_src>
import functools

import jax
import jax.numpy as jnp
import numpy as np
from jax.experimental import pallas as pl
from jax.experimental.pallas import tpu as pltpu


# ---------------------------------------------------------------------------
# Pallas kernel
# ---------------------------------------------------------------------------
def shortrope_kernel(cos_ref, sin_ref, rev_ref, x_ref, o_ref, *, n: int, lw: int):
    """Rotate the trailing `n` lanes of a (TS, lw) window of x."""
    half = n // 2
    lo = lw - n        # window column where the rotated region starts
    mid = lw - half    # window column where the "right" half starts

    x_win = x_ref[...]                 # (TS, lw)
    c = cos_ref[...]                   # (TS, half) f32
    s = sin_ref[...]                   # (TS, half) f32

    x_left = x_win[:, lo:mid]          # (TS, half)
    x_right = x_win[:, mid:]           # (TS, half)

    # Exact PyTorch semantics: the "right" update uses the ALREADY-rotated left.
    x_left_new = x_left * c - x_right * s
    x_right_new = x_left_new * s + x_right * c

    # torch.flip(x_right, dims=[-1]) * -1  ==  x_right @ rev,
    # where rev[i, half-1-i] = -1.0 (precomputed in the wrapper, exact in f32).
    x_right_new = jnp.dot(x_right_new, rev_ref[...],
                          preferred_element_type=jnp.float32)

    # Sub-slice stores (no lane-axis concatenate).  Window columns that are not
    # rotated are copied through unchanged; columns of x outside this window
    # are never touched at all (the output HBM buffer is aliased to x).
    if lo > 0:
        o_ref[:, :lo] = x_win[:, :lo]
    o_ref[:, lo:mid] = x_left_new.astype(o_ref.dtype)
    o_ref[:, mid:] = x_right_new.astype(o_ref.dtype)


# ---------------------------------------------------------------------------
# Parameter / table setup (deterministic, mirrors the PyTorch buffers)
# ---------------------------------------------------------------------------
def make_freq(n: int) -> jnp.ndarray:
    half = n // 2
    # PyTorch: 10000 ** (torch.arange(0, n // 2).float() / n // 2)
    #        == 10000 ** ((arange(half) / n) // 2)   (== all ones)
    return 10000.0 ** ((jnp.arange(half, dtype=jnp.float32) / n) // 2)


def make_sincos_tables(freq: jnp.ndarray, n: int, seq_len: int):
    t = jnp.arange(n, dtype=jnp.float32)
    freqs = t[:, None] * freq[None, :]                   # (n, half)
    num_repeats = seq_len // n + int(seq_len % n != 0)
    freqs = jnp.tile(freqs, (num_repeats, 1))[:seq_len]  # (S, half)
    return jnp.cos(freqs), jnp.sin(freqs)


def make_flip_neg(half: int) -> jnp.ndarray:
    """Permutation matrix implementing flip(last dim) * -1."""
    i = np.arange(half)[:, None]
    j = np.arange(half)[None, :]
    return jnp.asarray((j == (half - 1 - i)).astype(np.float32) * -1.0)


# ---------------------------------------------------------------------------
# Wrapper
# ---------------------------------------------------------------------------
def _pick_seq_tile(seq_len: int) -> int:
    # Full sequence for short inputs; 512 rows otherwise (divisible by 8, and
    # Pallas masks any ragged final tile).  512x128 f32 blocks keep double-
    # buffered VMEM use far below even v7x's 32 MiB scoped default.
    return seq_len if seq_len <= 512 else 512


def short_rope(x: jnp.ndarray, n: int) -> jnp.ndarray:
    B, S, D = x.shape
    half = n // 2

    freq = make_freq(n)                              # freq_left == freq_right
    cos_t, sin_t = make_sincos_tables(freq, n, S)    # (S, half) f32, shared
    rev = make_flip_neg(half)                        # (half, half) f32

    # Lane window: if D is a multiple of 128 and n fits in one lane tile, only
    # the last 128-lane tile of x is streamed through VMEM.  Otherwise the
    # block spans the full embedding dim (required by the (8,128) rule anyway).
    if D >= 128 and D % 128 == 0 and n <= 128:
        lw = 128
        lane_block = D // 128 - 1
    else:
        lw = D
        lane_block = 0

    ts = _pick_seq_tile(S)
    grid = (B, pl.cdiv(S, ts))

    kernel = functools.partial(shortrope_kernel, n=n, lw=lw)

    table_spec = pl.BlockSpec((ts, half), lambda b, si: (si, 0))
    rev_spec = pl.BlockSpec((half, half), lambda b, si: (0, 0))
    x_spec = pl.BlockSpec((None, ts, lw), lambda b, si: (b, si, lane_block))
    o_spec = pl.BlockSpec((None, ts, lw), lambda b, si: (b, si, lane_block))

    return pl.pallas_call(
        kernel,
        out_shape=jax.ShapeDtypeStruct((B, S, D), x.dtype),
        grid=grid,
        in_specs=[table_spec, table_spec, rev_spec, x_spec],
        out_specs=o_spec,
        # Reuse x's HBM buffer for the output: the columns outside the streamed
        # lane window are already correct and never move.
        input_output_aliases={3: 0},
        compiler_params=pltpu.CompilerParams(
            dimension_semantics=("parallel", "parallel")),
    )(cos_t, sin_t, rev, x)


# ---------------------------------------------------------------------------
# Pure-JAX reference (direct transcription of the PyTorch forward)
# ---------------------------------------------------------------------------
def short_rope_ref(x: jnp.ndarray, n: int) -> jnp.ndarray:
    B, S, D = x.shape
    half = n // 2
    freq_left = make_freq(n)
    freq_right = make_freq(n)

    x_unrotated = x[..., : D - n]
    x_rotated = x[..., D - n:]

    t = jnp.arange(n, dtype=jnp.float32)
    freqs_left = jnp.einsum("i,j->ij", t, freq_left)
    freqs_right = jnp.einsum("i,j->ij", t, freq_right)
    num_repeats = S // n + int(S % n != 0)
    freqs_left = jnp.tile(freqs_left[None], (B, num_repeats, 1))[:, :S, :]
    freqs_right = jnp.tile(freqs_right[None], (B, num_repeats, 1))[:, :S, :]

    x_left = x_rotated[..., :half]
    x_right = x_rotated[..., half:]
    x_left = x_left * jnp.cos(freqs_left) - x_right * jnp.sin(freqs_left)
    x_right = x_left * jnp.sin(freqs_right) + x_right * jnp.cos(freqs_right)
    x_right = jnp.flip(x_right, axis=-1) * -1
    x_rotated = jnp.concatenate([x_left, x_right], axis=-1)
    return jnp.concatenate([x_unrotated, x_rotated], axis=-1)


# ---------------------------------------------------------------------------
if __name__ == "__main__":
    n = 8

    # Two small configs:
    #   (2, 8, 32)   -> D < 128: the lane window is the full embedding dim.
    #   (2, 16, 256) -> D % 128 == 0: only the last 128-lane tile is streamed,
    #                   exercising the aliased partial-coverage output path.
    configs = [(2, 8, 32), (2, 16, 256)]

    fwd = jax.jit(short_rope, static_argnums=1)

    key = jax.random.PRNGKey(0)
    for (B, S, D) in configs:
        key, sub = jax.random.split(key)
        x = jax.random.normal(sub, (B, S, D), dtype=jnp.float32)
        ref = short_rope_ref(x, n)                 # reference first; x not donated
        out = jax.block_until_ready(fwd(x, n))
        np.testing.assert_allclose(np.asarray(out), np.asarray(ref),
                                   rtol=1e-5, atol=1e-5)

    print("KERNEL_OK")
</pallas_src>

<mosaic_0001>
module attributes {stable_mosaic.version = 11 : i64} {
  func.func @shortrope_kernel(%arg0: i32, %arg1: i32, %arg2: memref<8x4xf32, #tpu.memory_space<vmem>>, %arg3: memref<8x4xf32, #tpu.memory_space<vmem>>, %arg4: memref<4x4xf32, #tpu.memory_space<vmem>>, %arg5: memref<1x8x32xf32, #tpu.memory_space<vmem>>, %arg6: memref<1x8x32xf32, #tpu.memory_space<vmem>>) attributes {dimension_semantics = [#tpu.dimension_semantics<parallel>, #tpu.dimension_semantics<parallel>], iteration_bounds = array<i64: 2, 1>, scalar_prefetch = 0 : i64, scratch_operands = 0 : i64, tpu.core_type = #tpu.core_type<tc>, window_params = [{transform_indices = @transform_0, window_bounds = array<i64: 8, 4>}, {transform_indices = @transform_1, window_bounds = array<i64: 8, 4>}, {pipeline_mode = #tpu.pipeline_mode<synchronous>, transform_indices = @transform_2, window_bounds = array<i64: 4, 4>}, {transform_indices = @transform_3, window_bounds = array<i64: 1, 8, 32>}, {transform_indices = @transform_4, window_bounds = array<i64: 1, 8, 32>}]} {
    %c0 = arith.constant 0 : index
    %c0_0 = arith.constant 0 : index
    %c0_1 = arith.constant 0 : index
    %0 = vector.load %arg5[%c0, %c0_0, %c0_1] : memref<1x8x32xf32, #tpu.memory_space<vmem>>, vector<1x8x32xf32>
    %1 = vector.shape_cast %0 : vector<1x8x32xf32> to vector<8x32xf32>
    %c0_2 = arith.constant 0 : index
    %c0_3 = arith.constant 0 : index
    %2 = vector.load %arg2[%c0_2, %c0_3] : memref<8x4xf32, #tpu.memory_space<vmem>>, vector<8x4xf32>
    %c0_4 = arith.constant 0 : index
    %c0_5 = arith.constant 0 : index
    %3 = vector.load %arg3[%c0_4, %c0_5] : memref<8x4xf32, #tpu.memory_space<vmem>>, vector<8x4xf32>
    %4 = vector.extract_strided_slice %1 {offsets = [0, 24], sizes = [8, 4], strides = [1, 1]} : vector<8x32xf32> to vector<8x4xf32>
    %5 = vector.extract_strided_slice %1 {offsets = [0, 28], sizes = [8, 4], strides = [1, 1]} : vector<8x32xf32> to vector<8x4xf32>
    %6 = arith.mulf %4, %2 : vector<8x4xf32>
    %7 = arith.mulf %5, %3 : vector<8x4xf32>
    %8 = arith.subf %6, %7 : vector<8x4xf32>
    %9 = arith.mulf %8, %3 : vector<8x4xf32>
    %10 = arith.mulf %5, %2 : vector<8x4xf32>
    %11 = arith.addf %9, %10 : vector<8x4xf32>
    %c0_6 = arith.constant 0 : index
    %c0_7 = arith.constant 0 : index
    %12 = vector.load %arg4[%c0_6, %c0_7] : memref<4x4xf32, #tpu.memory_space<vmem>>, vector<4x4xf32>
    %cst = arith.constant dense<0.000000e+00> : vector<8x4xf32>
    %13 = tpu.matmul %11, %12, %cst {dimension_numbers = #tpu.dot_dimension_numbers<[1], [0], [0], [1], [0, 0, 1, 1], [], []>} : vector<8x4xf32>, vector<4x4xf32>, vector<8x4xf32> -> vector<8x4xf32>
    %14 = vector.extract_strided_slice %1 {offsets = [0, 0], sizes = [8, 24], strides = [1, 1]} : vector<8x32xf32> to vector<8x24xf32>
    %c0_8 = arith.constant 0 : index
    %c0_9 = arith.constant 0 : index
    %c0_10 = arith.constant 0 : index
    %15 = vector.load %arg6[%c0_8, %c0_9, %c0_10] : memref<1x8x32xf32, #tpu.memory_space<vmem>>, vector<1x8x24xf32>
    %16 = vector.shape_cast %15 : vector<1x8x24xf32> to vector<8x24xf32>
    %17 = vector.shape_cast %14 : vector<8x24xf32> to vector<1x8x24xf32>
    tpu.vector_store %arg6[%c0_8, %c0_9, %c0_10], %17 {strides = array<i32>} : memref<1x8x32xf32, #tpu.memory_space<vmem>>, vector<1x8x24xf32>,
    %c0_11 = arith.constant 0 : index
    %c0_12 = arith.constant 0 : index
    %c24 = arith.constant 24 : index
    %18 = vector.load %arg6[%c0_11, %c0_12, %c24] : memref<1x8x32xf32, #tpu.memory_space<vmem>>, vector<1x8x4xf32>
    %19 = vector.shape_cast %18 : vector<1x8x4xf32> to vector<8x4xf32>
    %20 = vector.shape_cast %8 : vector<8x4xf32> to vector<1x8x4xf32>
    tpu.vector_store %arg6[%c0_11, %c0_12, %c24], %20 {strides = array<i32>} : memref<1x8x32xf32, #tpu.memory_space<vmem>>, vector<1x8x4xf32>,
    %c0_13 = arith.constant 0 : index
    %c0_14 = arith.constant 0 : index
    %c28 = arith.constant 28 : index
    %21 = vector.load %arg6[%c0_13, %c0_14, %c28] : memref<1x8x32xf32, #tpu.memory_space<vmem>>, vector<1x8x4xf32>
    %22 = vector.shape_cast %21 : vector<1x8x4xf32> to vector<8x4xf32>
    %23 = vector.shape_cast %13 : vector<8x4xf32> to vector<1x8x4xf32>
    tpu.vector_store %arg6[%c0_13, %c0_14, %c28], %23 {strides = array<i32>} : memref<1x8x32xf32, #tpu.memory_space<vmem>>, vector<1x8x4xf32>,
    return
  }
  func.func @transform_0(%arg0: i32, %arg1: i32) -> (i32, i32) {
    %c0_i32 = arith.constant 0 : i32
    %c0_i32_0 = arith.constant 0 : i32
    return %arg1, %c0_i32 : i32, i32
  }
  func.func @transform_1(%arg0: i32, %arg1: i32) -> (i32, i32) {
    %c0_i32 = arith.constant 0 : i32
    %c0_i32_0 = arith.constant 0 : i32
    return %arg1, %c0_i32 : i32, i32
  }
  func.func @transform_2(%arg0: i32, %arg1: i32) -> (i32, i32) {
    %c0_i32 = arith.constant 0 : i32
    %c0_i32_0 = arith.constant 0 : i32
    %c0_i32_1 = arith.constant 0 : i32
    return %c0_i32, %c0_i32_0 : i32, i32
  }
  func.func @transform_3(%arg0: i32, %arg1: i32) -> (i32, i32, i32) {
    %c0_i32 = arith.constant 0 : i32
    %c0_i32_0 = arith.constant 0 : i32
    return %arg0, %arg1, %c0_i32 : i32, i32, i32
  }
  func.func @transform_4(%arg0: i32, %arg1: i32) -> (i32, i32, i32) {
    %c0_i32 = arith.constant 0 : i32
    %c0_i32_0 = arith.constant 0 : i32
    return %arg0, %arg1, %c0_i32 : i32, i32, i32
  }
}

</mosaic_0001>

<llo_original>
// kernel: short_rope.1
$region0: #{short_rope.1}
  #allocation0 [shape = 'u32[]', space=smem, size = 0x4, offset = 0x4, fixed_abs, tag = 'smem constant byte address 0x4 - core index']
  #allocation1 [shape = 'u32[144,128]{1,0:T(1,128)}', space=vmem, size = 0x12000, scoped, tag = 'internal scratch']
  %s0 = inlined_call_operand.vmem [shape: f32[8,4], index: 0, kind: input, shape index: {}]
  %s1 = inlined_call_operand.vmem [shape: f32[8,4], index: 1, kind: input, shape index: {}]
  %s2 = inlined_call_operand.vmem [shape: f32[4,4], index: 2, kind: input, shape index: {}]
  %s3 = inlined_call_operand.hbm [shape: f32[2,8,32], index: 3, kind: input, shape index: {}, may-alias: {3,4}]
  %s4 = inlined_call_operand.hbm [shape: f32[2,8,32], index: 4, kind: output, shape index: {}, may-alias: {3,4}]
  %s5 = sld [smem:[#allocation0]]
  $region53: #{short_rope.1} parent=0
    _
  %s7 = ssub.s32 1, %s5
  %s8 = scalar_select 0, %s7, %s5
  $region1: #{short_rope.1} parent=0
    #allocation2 [shape = 'u8[8192]{0}', space=vmem, size = 0x2000, scoped, tag = 'input window, operand 3']
    #allocation3 [shape = 's32[2]{0}', space=sflag, size = 0x8, scoped, tag = 'scoped memory for short_rope.1']
    #allocation4 [shape = 's32[2]{0}', space=sflag, size = 0x8, scoped, tag = 'scoped memory for short_rope.1']
    #allocation5 [shape = 'u8[8192]{0}', space=vmem, size = 0x2000, scoped, tag = 'output window, operand 0']
    %9 = vsyncpa [#allocation3], 0
    %s10 = scalar_lea.sflag [#allocation3], 1
    %11 = vsyncpa %s10, 0
    %12 = vsyncpa [#allocation4], 0
    %s13 = scalar_lea.sflag [#allocation4], 1
    %14 = vsyncpa %s13, 0
    loop: start=0, step=1, limit=4
    $region2: #{short_rope.1} parent=1 // loop_pre_header
      _
    $region3: #{short_rope.1} parent=1 // loop_header
      %s16 = sphi 0, %s20
      %p17 = scmp.ge.s32.totalorder %s16, 4
      %s23 = sphi 0, %s35
      %s24 = sphi 0, %s31
      %s25 = sphi 0, %s23
      %s26 = sphi 0, %s24
      %s27 = sphi 0, %s25
      %s28 = sphi 0, %s26
      %s38 = sphi 0, %s40
      %s41 = sphi 0, %s38
      %s42 = sphi 0, %s41
      %s58 = sphi 0, %s42
      %s64 = sphi 0, %s66
      %s67 = sphi 0, %s64
      %s68 = sphi 0, %s67
      %s84 = sphi 0, %s68
      %s88 = sphi 0, %s88
      %s90 = sphi 0, %s88
      %s91 = sphi 0, %s90
      %s105 = sphi 0, %s91
      %s113 = sphi 0, %s115
      %s116 = sphi 0, %s113
      %s117 = sphi 0, %s116
      %s133 = sphi 0, %s117
      %s141 = sphi 0, %s143
      %s144 = sphi 0, %s141
      %s145 = sphi 0, %s144
      %s161 = sphi 0, %s145
    $region4: #{short_rope.1} parent=1 // loop_header_branch
      %19 = sbr.rel (%p17) target = $region8
    $region5: #{short_rope.1} parent=1 // loop_body
      %s21 = ssub.s32 %s16, 1
      %s22 = ssub.s32 %s16, 2
      %s29 = sadd.s32 1, %s24
      %p30 = scmp.ge.s32.totalorder %s29, 1
      %s31 = scalar_select %p30, 0, %s29
      %s32 = sadd.s32 1, %s23
      %s33 = scalar_select %p30, %s32, %s23
      %p34 = scmp.ge.s32.totalorder %s33, 2
      %s35 = scalar_select %p34, 0, %s33
      %s36 = ssub.s32 %s24, %s31
      %p37 = scmp.eq.s32.totalorder %s36, 0
      %s39 = sadd.s32 %s38, 1
      %s40 = scalar_select %p37, %s38, %s39
      %p43 = pneg %p37
      %p44 = scmp.eq.s32.totalorder %s16, 1
      %p45 = por %p43, %p44
      %p46 = scmp.ne.s32.totalorder %s38, %s41
      %p47 = scmp.eq.s32.totalorder %s16, 0
      %p48 = por %p46, %p47
      %p49 = scmp.ne.s32.totalorder %s38, %s41
      %p50 = scmp.eq.s32.totalorder %s21, 1
      %p51 = por %p49, %p50
      %p52 = scmp.ne.s32.totalorder %s41, %s42
      %p53 = scmp.eq.s32.totalorder %s21, 0
      %p54 = por %p52, %p53
      %p55 = scmp.ne.s32.totalorder %s41, %s42
      %p56 = scmp.eq.s32.totalorder %s22, 1
      %p57 = por %p55, %p56
      %p59 = scmp.ne.s32.totalorder %s42, %s58
      %p60 = scmp.eq.s32.totalorder %s22, 0
      %p61 = por %p59, %p60
      %s62 = ssub.s32 %s24, %s31
      %p63 = scmp.eq.s32.totalorder %s62, 0
      %s65 = sadd.s32 %s64, 1
      %s66 = scalar_select %p63, %s64, %s65
      %p69 = pneg %p63
      %p70 = scmp.eq.s32.totalorder %s16, 1
      %p71 = por %p69, %p70
      %p72 = scmp.ne.s32.totalorder %s64, %s67
      %p73 = scmp.eq.s32.totalorder %s16, 0
      %p74 = por %p72, %p73
      %p75 = scmp.ne.s32.totalorder %s64, %s67
      %p76 = scmp.eq.s32.totalorder %s21, 1
      %p77 = por %p75, %p76
      %p78 = scmp.ne.s32.totalorder %s67, %s68
      %p79 = scmp.eq.s32.totalorder %s21, 0
      %p80 = por %p78, %p79
      %p81 = scmp.ne.s32.totalorder %s67, %s68
      %p82 = scmp.eq.s32.totalorder %s22, 1
      %p83 = por %p81, %p82
      %p85 = scmp.ne.s32.totalorder %s68, %s84
      %p86 = scmp.eq.s32.totalorder %s22, 0
      %p87 = por %p85, %p86
      %s89 = sadd.s32 %s88, 1
      %p92 = scmp.eq.s32.totalorder %s16, 1
      %p93 = scmp.ne.s32.totalorder %s88, %s90
      %p94 = scmp.eq.s32.totalorder %s16, 0
      %p95 = por %p93, %p94
      %p96 = scmp.ne.s32.totalorder %s88, %s90
      %p97 = scmp.eq.s32.totalorder %s21, 1
      %p98 = por %p96, %p97
      %p99 = scmp.ne.s32.totalorder %s90, %s91
      %p100 = scmp.eq.s32.totalorder %s21, 0
      %p101 = por %p99, %p100
      %p102 = scmp.ne.s32.totalorder %s90, %s91
      %p103 = scmp.eq.s32.totalorder %s22, 1
      %p104 = por %p102, %p103
      %p106 = scmp.ne.s32.totalorder %s91, %s105
      %p107 = scmp.eq.s32.totalorder %s22, 0
      %p108 = por %p106, %p107
      %s109 = ssub.s32 %s23, %s35
      %s110 = ssub.s32 %s24, %s31
      %s111 = sor.u32 %s109, %s110
      %p112 = scmp.eq.s32.totalorder %s111, 0
      %s114 = sadd.s32 %s113, 1
      %s115 = scalar_select %p112, %s113, %s114
      %p118 = pneg %p112
      %p119 = scmp.eq.s32.totalorder %s16, 1
      %p120 = por %p118, %p119
      %p121 = scmp.ne.s32.totalorder %s113, %s116
      %p122 = scmp.eq.s32.totalorder %s16, 0
      %p123 = por %p121, %p122
      %p124 = scmp.ne.s32.totalorder %s113, %s116
      %p125 = scmp.eq.s32.totalorder %s21, 1
      %p126 = por %p124, %p125
      %p127 = scmp.ne.s32.totalorder %s116, %s117
      %p128 = scmp.eq.s32.totalorder %s21, 0
      %p129 = por %p127, %p128
      %p130 = scmp.ne.s32.totalorder %s116, %s117
      %p131 = scmp.eq.s32.totalorder %s22, 1
      %p132 = por %p130, %p131
      %p134 = scmp.ne.s32.totalorder %s117, %s133
      %p135 = scmp.eq.s32.totalorder %s22, 0
      %p136 = por %p134, %p135
      %s137 = ssub.s32 %s23, %s35
      %s138 = ssub.s32 %s24, %s31
      %s139 = sor.u32 %s137, %s138
      %p140 = scmp.eq.s32.totalorder %s139, 0
      %s142 = sadd.s32 %s141, 1
      %s143 = scalar_select %p140, %s141, %s142
      %p146 = pneg %p140
      %p147 = scmp.eq.s32.totalorder %s16, 1
      %p148 = por %p146, %p147
      %p149 = scmp.ne.s32.totalorder %s141, %s144
      %p150 = scmp.eq.s32.totalorder %s16, 0
      %p151 = por %p149, %p150
      %p152 = scmp.ne.s32.totalorder %s141, %s144
      %p153 = scmp.eq.s32.totalorder %s21, 1
      %p154 = por %p152, %p153
      %p155 = scmp.ne.s32.totalorder %s144, %s145
      %p156 = scmp.eq.s32.totalorder %s21, 0
      %p157 = por %p155, %p156
      %p158 = scmp.ne.s32.totalorder %s144, %s145
      %p159 = scmp.eq.s32.totalorder %s22, 1
      %p160 = por %p158, %p159
      %p162 = scmp.ne.s32.totalorder %s145, %s161
      %p163 = scmp.eq.s32.totalorder %s22, 0
      %p164 = por %p162, %p163
      %p165 = scmp.le.s32.totalorder 1, %s16
      %p166 = scmp.lt.s32.totalorder %s16, 3
      %p167 = pnand %p165, %p166
      %p168 = pneg %p167
      // Predicated region
      $region9: #{short_rope.1} parent=5 // pred_check
        _
      $region10: #{short_rope.1} parent=5 // pred_check_branch
        %170 = sbr.rel (%p167) target = $region12
      $region11: #{short_rope.1} parent=5 // pred_region
        %s171 = ssub.s32 %s16, 1
        // Predicated region
        $region13: #{short_rope.1} parent=11 // pred_check
          %p172 = pneg %p54
        $region14: #{short_rope.1} parent=11 // pred_check_branch
          %174 = sbr.rel (%p172) target = $region16
        $region15: #{short_rope.1} parent=11 // pred_region
          %p175 = scmp.lt.s32.totalorder %s26, 0
          %s176 = scalar_select %p175, %s26, 0
          %s177 = smul.addr %s176, 8
          %s178 = scalar_lea.vmem %s0, %s177
        $region16: #{short_rope.1} parent=11 // pred_fallthru
          _
        // Predicated region
        $region17: #{short_rope.1} parent=11 // pred_check
          %p179 = pneg %p80
        $region18: #{short_rope.1} parent=11 // pred_check_branch
          %181 = sbr.rel (%p179) target = $region20
        $region19: #{short_rope.1} parent=11 // pred_region
          %p182 = scmp.lt.s32.totalorder %s26, 0
          %s183 = scalar_select %p182, %s26, 0
          %s184 = smul.addr %s183, 8
          %s185 = scalar_lea.vmem %s1, %s184
        $region20: #{short_rope.1} parent=11 // pred_fallthru
          _
        // Predicated region
        $region21: #{short_rope.1} parent=11 // pred_check
          %p186 = pneg %p101
        $region22: #{short_rope.1} parent=11 // pred_check_branch
          %188 = sbr.rel (%p186) target = $region24
        $region23: #{short_rope.1} parent=11 // pred_region
          _
        $region24: #{short_rope.1} parent=11 // pred_fallthru
          _
      $region12: #{short_rope.1} parent=5 // pred_fallthru
        _
      %p189 = scmp.lt.s32.totalorder %s16, 2
      // Predicated region
      $region25: #{short_rope.1} parent=5 // pred_check
        %p190 = pneg %p189
      $region26: #{short_rope.1} parent=5 // pred_check_branch
        %192 = sbr.rel (%p190) target = $region28
      $region27: #{short_rope.1} parent=5 // pred_region
        // Predicated region
        $region29: #{short_rope.1} parent=27 // pred_check
          %p193 = pneg %p123
        $region30: #{short_rope.1} parent=27 // pred_check_branch
          %195 = sbr.rel (%p193) target = $region32
        $region31: #{short_rope.1} parent=27 // pred_region
          %s196 = sand.u32 %s113, 1
          %s197 = scalar_lea.sflag [#allocation3], %s196
          %s198 = sand.u32 %s113, 1
          %s199 = smul.addr %s198, 8
          %s200 = scalar_lea.vmem [#allocation2], %s199
          %s202 = ssub.s32 128, 128
          %203 = vsyncadd %s197, %s202
          %s204 = sadd.s32 %s24, %s23
          %s205 = smul.addr %s204, 128
          %s206 = scalar_lea.hbm %s3, %s205
          %s208 = sshll.u32 %s200, 4
          %s209 = int_to_ptr.vmem [resolvable:$true] %s208
          %211 = dma.hbm_to_vmem [thread:$0]  %s206, 128, %s209, %s197
        $region32: #{short_rope.1} parent=27 // pred_fallthru
          _
      $region28: #{short_rope.1} parent=5 // pred_fallthru
        _
      %p212 = scmp.le.s32.totalorder 1, %s16
      %p213 = scmp.lt.s32.totalorder %s16, 3
      %p214 = pnand %p212, %p213
      %p215 = pneg %p214
      // Predicated region
      $region33: #{short_rope.1} parent=5 // pred_check
        _
      $region34: #{short_rope.1} parent=5 // pred_check_branch
        %217 = sbr.rel (%p214) target = $region36
      $region35: #{short_rope.1} parent=5 // pred_region
        %s218 = ssub.s32 %s16, 1
        %s219 = sand.u32 %s116, 1
        %s220 = scalar_lea.sflag [#allocation3], %s219
        %s221 = sand.u32 %s116, 1
        %s222 = smul.addr %s221, 8
        %s223 = scalar_lea.vmem [#allocation2], %s222
        // Predicated region
        $region37: #{short_rope.1} parent=35 // pred_check
          %p224 = pneg %p129
        $region38: #{short_rope.1} parent=35 // pred_check_branch
          %226 = sbr.rel (%p224) target = $region40
        $region39: #{short_rope.1} parent=35 // pred_region
          %227 = dma.done %s220, 128
        $region40: #{short_rope.1} parent=35 // pred_fallthru
          _
        %p228 = scmp.lt.s32.totalorder %s26, 0
        %s229 = scalar_select %p228, %s26, 0
        %s230 = smul.addr %s229, 8
        %s231 = scalar_lea.vmem %s0, %s230
        %p232 = pneg %p54
        %p233 = pneg %p51
        %p234 = scmp.lt.s32.totalorder %s26, 0
        %s235 = scalar_select %p234, %s26, 0
        %s236 = smul.addr %s235, 8
        %s237 = scalar_lea.vmem %s1, %s236
        %p238 = pneg %p80
        %p239 = pneg %p77
        %p240 = pneg %p101
        %p241 = pneg %p98
        %s242 = sand.u32 %s116, 1
        %s243 = scalar_lea.sflag [#allocation3], %s242
        %s244 = sand.u32 %s116, 1
        %s245 = smul.addr %s244, 8
        %s246 = scalar_lea.vmem [#allocation2], %s245
        %p247 = pneg %p129
        %p248 = pneg %p126
        %p249 = pneg %p157
        %p250 = pneg %p154
        %s251 = sand.u32 %s144, 1
        %s252 = scalar_lea.sflag [#allocation4], %s251
        %s253 = sand.u32 %s144, 1
        %s254 = smul.addr %s253, 8
        %s255 = scalar_lea.vmem [#allocation5], %s254
        %p256 = scmp.lt.s32.totalorder %s26, 0
        %s257 = scalar_select %p256, %s26, 0
        %s258 = smul.addr %s257, 8
        %s259 = scalar_lea.vmem %s0, %s258
        %p260 = scmp.lt.s32.totalorder %s26, 0
        %s261 = scalar_select %p260, %s26, 0
        %s262 = smul.addr %s261, 8
        %s263 = scalar_lea.vmem %s1, %s262
        %v264 = vld [vmem:[%s223] sm:$0xff]
        %v265 = vld [vmem:[%s259] sm:$0xff]
        %v266 = vld [vmem:[%s263] sm:$0xff]
        %268 = vrot.lane.b32.xlu0 %v265, 24
        %v269 = vpop.permute.xlu0 %268
        %v271 = vmul.f32 %v264, %v269
        %273 = vrot.lane.b32.xlu0 %v266, 28
        %v274 = vpop.permute.xlu0 %273
        %v276 = vmul.f32 %v264, %v274
        %278 = vrot.lane.b32.xlu0 %v276, 124
        %v279 = vpop.permute.xlu0 %278
        %v281 = vsub.f32 %v271, %v279
        %282 = vrot.lane.b32.xlu0 %v266, 24
        %v283 = vpop.permute.xlu0 %282
        %v285 = vmul.f32 %v281, %v283
        %286 = vrot.lane.b32.xlu0 %v265, 28
        %v287 = vpop.permute.xlu0 %286
        %v289 = vmul.f32 %v264, %v287
        %291 = vrot.lane.b32.xlu0 %v289, 124
        %v292 = vpop.permute.xlu0 %291
        %v294 = vadd.f32 %v285, %v292
        %v295 = vld [vmem:[%s2] sm:$0xf]
        %297 = vrot.lane.b32.xlu0 %v294, 104
        %v298 = vpop.permute.xlu0 %297
        %vm299 = vcmask 31744
        %v300 = vsel %vm299, %v298, 0
        %vm302 = vcmask 1043456
        %v304 = vsel %vm302, %v295, 0
        %306 = vmatprep.subr.mxu0 0.0
        %307 = vmatpush1.msra.mxu0 %v304
        %308 = vmatprep.subr.mxu0 0.0
        %309 = vmatpush1.msra.mxu0 0.0
        %310 = vmatprep.subr.mxu0 0.0
        %311 = vmatpush1.msra.mxu0 0.0
        %312 = vmatprep.subr.mxu0 0.0
        %313 = vmatpush1.msra.mxu0 0.0
        %314 = vmatprep.subr.mxu0 0.0
        %315 = vmatpush1.msra.mxu0 0.0
        %316 = vmatprep.subr.mxu0 0.0
        %317 = vmatpush1.msra.mxu0 0.0
        %318 = vmatprep.subr.mxu0 0.0
        %319 = vmatpush1.msra.mxu0 0.0
        %320 = vmatprep.subr.mxu0 0.0
        %321 = vmatpush1.msra.mxu0 0.0
        %322 = vmatprep.subr.mxu0 0.0
        %323 = vmatpush1.msra.mxu0 0.0
        %324 = vmatprep.subr.mxu0 0.0
        %325 = vmatpush1.msra.mxu0 0.0
        %326 = vmatprep.subr.mxu0 0.0
        %327 = vmatpush1.msra.mxu0 0.0
        %328 = vmatprep.subr.mxu0 0.0
        %329 = vmatpush1.msra.mxu0 0.0
        %330 = vmatprep.subr.mxu0 0.0
        %331 = vmatpush1.msra.mxu0 0.0
        %332 = vmatprep.subr.mxu0 0.0
        %333 = vmatpush1.msra.mxu0 0.0
        %334 = vmatprep.subr.mxu0 0.0
        %335 = vmatpush1.msra.mxu0 0.0
        %336 = vmatprep.subr.mxu0 0.0
        %337 = vmatpush1.msra.mxu0 0.0
        %338 = vmatprep.subr.mxu0 0.0
        %339 = vmatpush1.msra.mxu0 0.0
        %340 = vmatprep.subr.mxu0 0.0
        %341 = vmatpush1.msra.mxu0 0.0
        %342 = vmatprep.subr.mxu0 0.0
        %343 = vmatpush1.msra.mxu0 0.0
        %344 = vmatprep.subr.mxu0 0.0
        %345 = vmatpush1.msra.mxu0 0.0
        %346 = vmatprep.subr.mxu0 0.0
        %347 = vmatpush1.msra.mxu0 0.0
        %348 = vmatprep.subr.mxu0 0.0
        %349 = vmatpush1.msra.mxu0 0.0
        %350 = vmatprep.subr.mxu0 0.0
        %351 = vmatpush1.msra.mxu0 0.0
        %352 = vmatprep.subr.mxu0 0.0
        %353 = vmatpush1.msra.mxu0 0.0
        %354 = vmatprep.subr.mxu0 0.0
        %355 = vmatpush1.msra.mxu0 0.0
        %356 = vmatprep.subr.mxu0 0.0
        %357 = vmatpush1.msra.mxu0 0.0
        %358 = vmatprep.subr.mxu0 0.0
        %359 = vmatpush1.msra.mxu0 0.0
        %360 = vmatprep.subr.mxu0 0.0
        %361 = vmatpush1.msra.mxu0 0.0
        %362 = vmatprep.subr.mxu0 0.0
        %363 = vmatpush1.msra.mxu0 0.0
        %364 = vmatprep.subr.mxu0 0.0
        %365 = vmatpush1.msra.mxu0 0.0
        %366 = vmatprep.subr.mxu0 0.0
        %367 = vmatpush1.msra.mxu0 0.0
        %368 = vmatprep.subr.mxu0 0.0
        %369 = vmatpush1.msra.mxu0 0.0
        %370 = vmatprep.mubr.f32.mxu0 0.0
        %371 = vmatmul.mubr.f32.gmra.mrb[0].mxu0 %v300
        %v372 = vpop.f32.mrb[0].mxu0
        %v373 = vadd.f32 0.0, %v372
        %v374 = vpop.f32.mrb[0].mxu0
        %375 = vdwg.mxu0
        %vm376 = vcmask 195584
        %377 = vst.msk [vmem:[%s255] sm:$0xff] %vm376, %v264
        %vm378 = vcmask 228544
        %379 = vst.msk [vmem:[%s255] sm:$0xff] %vm378, %v281
        %381 = vrot.lane.b32.xlu0 %v373, 28
        %v382 = vpop.permute.xlu0 %381
        %vm384 = vcmask 261344
        %385 = vst.msk [vmem:[%s255] sm:$0xff] %vm384, %v382
        %s386 = sand.u32 %s144, 1
        %s387 = scalar_lea.sflag [#allocation4], %s386
        %s388 = sand.u32 %s144, 1
        %s389 = smul.addr %s388, 8
        %s390 = scalar_lea.vmem [#allocation5], %s389
        // Predicated region
        $region41: #{short_rope.1} parent=35 // pred_check
          %p391 = pneg %p154
        $region42: #{short_rope.1} parent=35 // pred_check_branch
          %393 = sbr.rel (%p391) target = $region44
        $region43: #{short_rope.1} parent=35 // pred_region
          %s395 = ssub.s32 128, 128
          %396 = vsyncadd %s387, %s395
          %s397 = sadd.s32 %s26, %s25
          %s398 = smul.addr %s397, 128
          %s399 = scalar_lea.hbm %s4, %s398
          %s401 = sshll.u32 %s390, 4
          %s402 = int_to_ptr.vmem [resolvable:$true] %s401
          %404 = dma.vmem_to_hbm [thread:$0]  %s402, 128, %s399, %s387
        $region44: #{short_rope.1} parent=35 // pred_fallthru
          _
      $region36: #{short_rope.1} parent=5 // pred_fallthru
        _
      %p405 = scmp.le.s32.totalorder 2, %s16
      // Predicated region
      $region45: #{short_rope.1} parent=5 // pred_check
        %p406 = pneg %p405
      $region46: #{short_rope.1} parent=5 // pred_check_branch
        %408 = sbr.rel (%p406) target = $region48
      $region47: #{short_rope.1} parent=5 // pred_region
        %s409 = ssub.s32 %s16, 2
        // Predicated region
        $region49: #{short_rope.1} parent=47 // pred_check
          %p410 = pneg %p160
        $region50: #{short_rope.1} parent=47 // pred_check_branch
          %412 = sbr.rel (%p410) target = $region52
        $region51: #{short_rope.1} parent=47 // pred_region
          %s413 = sand.u32 %s145, 1
          %s414 = scalar_lea.sflag [#allocation4], %s413
          %s415 = sand.u32 %s145, 1
          %s416 = smul.addr %s415, 8
          %s417 = scalar_lea.vmem [#allocation5], %s416
          %418 = dma.done %s414, 128
        $region52: #{short_rope.1} parent=47 // pred_fallthru
          _
      $region48: #{short_rope.1} parent=5 // pred_fallthru
        _
    $region6: #{short_rope.1} parent=1 // loop_footer
      %s20 = sadd.s32 1, %s16
    $region7: #{short_rope.1} parent=1 // loop_footer_branch
      %15 = sbr.rel target = $region3
    $region8: #{short_rope.1} parent=1 // loop_exit
      _
    %419 = vsyncpa [#allocation3], 1
    %s420 = scalar_lea.sflag [#allocation3], 1
    %421 = vsyncpa %s420, 1
    %422 = vsyncpa [#allocation4], 1
    %s423 = scalar_lea.sflag [#allocation4], 1
    %424 = vsyncpa %s423, 1

</llo_original>
